<compile_context>
chip_gen: v5e
topology: v5e:2x2
jax: 0.10.0
libtpu: 0.0.40
codegen_flags: <defaults>
</compile_context>

<pallas_src>
import functools

import jax
import jax.numpy as jnp
from jax import lax
from jax.experimental import pallas as pl
from jax.experimental.pallas import tpu as pltpu


def _round_up(n, m):
    return ((n + m - 1) // m) * m


def _patch_embed_kernel(*refs, apply_norm: bool, eps: float, e_valid: int):
    # refs (norm on):  p_ref (tm, K), w_ref (K, Ep), b_ref (1, Ep),
    #                  g_ref (1, Ep), beta_ref (1, Ep), o_ref (tm, Ep)
    # refs (norm off): p_ref, w_ref, b_ref, o_ref
    if apply_norm:
        p_ref, w_ref, b_ref, g_ref, beta_ref, o_ref = refs
    else:
        p_ref, w_ref, b_ref, o_ref = refs
        g_ref = beta_ref = None

    acc = jnp.dot(p_ref[...], w_ref[...], preferred_element_type=jnp.float32)
    acc = acc + b_ref[...].astype(jnp.float32)

    if apply_norm:
        e_pad = acc.shape[-1]
        if e_pad != e_valid:
            # E was padded to a lane-dense multiple of 128: mask padded cols
            # out of the LayerNorm statistics (valid columns stay exact).
            col = lax.broadcasted_iota(jnp.int32, acc.shape, 1)
            valid = col < e_valid
            inv_e = 1.0 / float(e_valid)
            accv = jnp.where(valid, acc, 0.0)
            mean = jnp.sum(accv, axis=-1, keepdims=True) * inv_e
            cent = jnp.where(valid, acc - mean, 0.0)
            var = jnp.sum(cent * cent, axis=-1, keepdims=True) * inv_e
        else:
            mean = jnp.mean(acc, axis=-1, keepdims=True)
            var = jnp.mean((acc - mean) ** 2, axis=-1, keepdims=True)
        acc = (acc - mean) * lax.rsqrt(var + eps)
        acc = acc * g_ref[...].astype(jnp.float32) + beta_ref[...].astype(jnp.float32)

    o_ref[...] = acc.astype(o_ref.dtype)


def patch_embed_forward(x, weight, bias, gamma=None, beta=None, *,
                        patch_size=4, eps=1e-5, tm=512, compute_dtype=None):
    """Forward pass of PatchEmbed.

    x:      (B, C, H, W)  NCHW, like the PyTorch module.
    weight: (E, C, p, p)  nn.Conv2d weight.
    bias:   (E,)          nn.Conv2d bias.
    gamma/beta: (E,) LayerNorm affine params, or None for norm=None.
    tm:     M-tile size (rows per grid step), tuned per shape.
    compute_dtype: optional dtype (e.g. jnp.bfloat16) for the matmul inputs;
        accumulation is always f32.
    Returns (B, E, H_out, W_out) with H_out = ceil(H/p), W_out = ceil(W/p).
    """
    p = patch_size
    B, C, H, W = x.shape
    E = weight.shape[0]
    out_dtype = x.dtype

    # --- padding (matches F.pad right/bottom zero pad) -----------------------
    pad_h = (p - H % p) % p
    pad_w = (p - W % p) % p
    if pad_h or pad_w:
        x = jnp.pad(x, ((0, 0), (0, 0), (0, pad_h), (0, pad_w)))
    Hp, Wp = (H + pad_h) // p, (W + pad_w) // p

    # --- patch extraction (wrapper glue) -------------------------------------
    # TODO(synk): the patchify transpose and the final NCHW transpose are still
    # XLA-side HBM copies; folding patch extraction into the kernel via a
    # (1, C, p, Wp*p) row-strip BlockSpec would save one HBM round trip.
    patches = x.reshape(B, C, Hp, p, Wp, p)
    patches = patches.transpose(0, 2, 4, 1, 3, 5).reshape(B * Hp * Wp, C * p * p)
    w_mat = weight.reshape(E, C * p * p).T          # (K, E), conv == patches @ w + b

    if compute_dtype is not None:
        patches = patches.astype(compute_dtype)
        w_mat = w_mat.astype(compute_dtype)

    M, K = patches.shape

    # --- lane-dense E: pad embed dim to a multiple of 128 --------------------
    E_pad = max(128, _round_up(E, 128))
    if E_pad != E:
        w_mat = jnp.pad(w_mat, ((0, 0), (0, E_pad - E)))
        bias = jnp.pad(bias, (0, E_pad - E))
        if gamma is not None:
            gamma = jnp.pad(gamma, (0, E_pad - E))
            beta = jnp.pad(beta, (0, E_pad - E))
    b_mat = bias.reshape(1, E_pad).astype(jnp.float32)

    apply_norm = gamma is not None

    # --- M tiling: big blocks, cdiv grid, row padding -------------------------
    block_m = min(tm, _round_up(M, 16))      # 16-sublane aligned (bf16-safe)
    M_pad = _round_up(M, block_m)
    if M_pad != M:
        patches = jnp.pad(patches, ((0, M_pad - M), (0, 0)))
    grid_m = M_pad // block_m

    in_args = [patches, w_mat, b_mat]
    in_specs = [
        pl.BlockSpec((block_m, K), lambda i: (i, 0)),   # patch rows
        pl.BlockSpec((K, E_pad), lambda i: (0, 0)),     # projection weight (resident)
        pl.BlockSpec((1, E_pad), lambda i: (0, 0)),     # bias
    ]
    if apply_norm:
        g_mat = gamma.reshape(1, E_pad).astype(jnp.float32)
        beta_mat = beta.reshape(1, E_pad).astype(jnp.float32)
        in_args += [g_mat, beta_mat]
        in_specs += [pl.BlockSpec((1, E_pad), lambda i: (0, 0)),
                     pl.BlockSpec((1, E_pad), lambda i: (0, 0))]

    kernel = functools.partial(_patch_embed_kernel, apply_norm=apply_norm,
                               eps=eps, e_valid=E)

    in_bytes = jnp.dtype(patches.dtype).itemsize
    out_bytes = jnp.dtype(out_dtype).itemsize
    cost = pl.CostEstimate(
        flops=2 * M_pad * K * E_pad,
        transcendentals=0,
        bytes_accessed=(M_pad * K * in_bytes + K * E_pad * in_bytes
                        + M_pad * E_pad * out_bytes))

    # VMEM budget: double-buffered input/output blocks + resident weight.
    vmem_need = (2 * block_m * K * in_bytes
                 + 2 * K * E_pad * in_bytes
                 + 2 * block_m * E_pad * out_bytes
                 + 8 * E_pad * 4)
    vmem_limit = int(min(48 << 20, max(32 << 20, 2 * vmem_need)))

    out_flat = pl.pallas_call(
        kernel,
        out_shape=jax.ShapeDtypeStruct((M_pad, E_pad), out_dtype),
        grid_spec=pltpu.PrefetchScalarGridSpec(
            num_scalar_prefetch=0,
            grid=(grid_m,),
            in_specs=in_specs,
            out_specs=pl.BlockSpec((block_m, E_pad), lambda i: (i, 0)),
        ),
        compiler_params=pltpu.CompilerParams(
            dimension_semantics=("parallel",),
            vmem_limit_bytes=vmem_limit),
        cost_estimate=cost,
    )(*in_args)

    # Drop M/E padding, then (M, E) -> (B, Hp, Wp, E) -> (B, E, Hp, Wp).
    out_flat = out_flat[:M, :E]
    return out_flat.reshape(B, Hp, Wp, E).transpose(0, 3, 1, 2)


# ---------------------------------------------------------------------------
# Pure-JAX references
# ---------------------------------------------------------------------------
def _reference_forward(x, weight, bias, *, patch_size=4):
    """Strided conv (NCHW), norm=None path."""
    p = patch_size
    B, C, H, W = x.shape
    pad_h = (p - H % p) % p
    pad_w = (p - W % p) % p
    if pad_h or pad_w:
        x = jnp.pad(x, ((0, 0), (0, 0), (0, pad_h), (0, pad_w)))
    out = lax.conv_general_dilated(
        x, weight, window_strides=(p, p), padding="VALID",
        dimension_numbers=("NCHW", "OIHW", "NCHW"))
    return out + bias.reshape(1, -1, 1, 1)


def _reference_forward_norm(x, weight, bias, gamma, beta, *, patch_size=4, eps=1e-5):
    """Conv + LayerNorm over embed_dim, output NCHW (matches the module)."""
    out = _reference_forward(x, weight, bias, patch_size=patch_size)
    B, E, Hp, Wp = out.shape
    t = out.reshape(B, E, Hp * Wp).transpose(0, 2, 1)          # (B, L, E)
    mean = t.mean(-1, keepdims=True)
    var = ((t - mean) ** 2).mean(-1, keepdims=True)
    t = (t - mean) / jnp.sqrt(var + eps) * gamma + beta
    return t.transpose(0, 2, 1).reshape(B, E, Hp, Wp)


if __name__ == "__main__":
    key = jax.random.PRNGKey(0)
    k_x, k_w, k_b, k_g, k_bt = jax.random.split(key, 5)

    B, C, H, W = 2, 4, 16, 16
    patch_size = 4
    embed_dim = 32

    x = jax.random.normal(k_x, (B, C, H, W), jnp.float32)
    weight = jax.random.normal(k_w, (embed_dim, C, patch_size, patch_size),
                               jnp.float32) * 0.05
    bias = jax.random.normal(k_b, (embed_dim,), jnp.float32) * 0.05

    # 1) Default module config: norm=None -> output is the conv output (NCHW).
    out = patch_embed_forward(x, weight, bias, patch_size=patch_size)
    out = jax.block_until_ready(out)
    ref = _reference_forward(x, weight, bias, patch_size=patch_size)
    assert out.shape == (B, embed_dim, H // patch_size, W // patch_size)
    assert jnp.allclose(out, ref, atol=1e-4, rtol=1e-4)

    # 2) LayerNorm path (non-trivial gamma/beta), f32.
    gamma = 1.0 + 0.1 * jax.random.normal(k_g, (embed_dim,), jnp.float32)
    beta = 0.05 * jax.random.normal(k_bt, (embed_dim,), jnp.float32)
    out_norm = patch_embed_forward(x, weight, bias, gamma, beta,
                                   patch_size=patch_size)
    out_norm = jax.block_until_ready(out_norm)
    ref_norm = _reference_forward_norm(x, weight, bias, gamma, beta,
                                       patch_size=patch_size)
    assert jnp.allclose(out_norm, ref_norm, atol=2e-4, rtol=2e-4)

    # 3) bf16 compute path (f32 accumulation), looser tolerance.
    out_bf16 = patch_embed_forward(x, weight, bias, patch_size=patch_size,
                                   compute_dtype=jnp.bfloat16)
    out_bf16 = jax.block_until_ready(out_bf16)
    assert jnp.allclose(out_bf16, ref, atol=2e-2, rtol=2e-2)

    print("KERNEL_OK")
</pallas_src>

<mosaic_0001>
module attributes {stable_mosaic.version = 11 : i64} {
  func.func @_patch_embed_kernel(%arg0: i32, %arg1: memref<32x64xf32, #tpu.memory_space<vmem>>, %arg2: memref<64x128xf32, #tpu.memory_space<vmem>>, %arg3: memref<1x128xf32, #tpu.memory_space<vmem>>, %arg4: memref<32x128xf32, #tpu.memory_space<vmem>>) attributes {dimension_semantics = [#tpu.dimension_semantics<parallel>], iteration_bounds = array<i64: 1>, scalar_prefetch = 0 : i64, scratch_operands = 0 : i64, tpu.core_type = #tpu.core_type<tc>, window_params = [{transform_indices = @transform_0, window_bounds = array<i64: 32, 64>}, {pipeline_mode = #tpu.pipeline_mode<synchronous>, transform_indices = @transform_1, window_bounds = array<i64: 64, 128>}, {pipeline_mode = #tpu.pipeline_mode<synchronous>, transform_indices = @transform_2, window_bounds = array<i64: 1, 128>}, {transform_indices = @transform_3, window_bounds = array<i64: 32, 128>}]} {
    %c0 = arith.constant 0 : index
    %c0_0 = arith.constant 0 : index
    %0 = vector.load %arg1[%c0, %c0_0] : memref<32x64xf32, #tpu.memory_space<vmem>>, vector<32x64xf32>
    %c0_1 = arith.constant 0 : index
    %c0_2 = arith.constant 0 : index
    %1 = vector.load %arg2[%c0_1, %c0_2] : memref<64x128xf32, #tpu.memory_space<vmem>>, vector<64x128xf32>
    %cst = arith.constant dense<0.000000e+00> : vector<32x128xf32>
    %2 = tpu.matmul %0, %1, %cst {dimension_numbers = #tpu.dot_dimension_numbers<[1], [0], [0], [1], [0, 0, 1, 1], [], []>} : vector<32x64xf32>, vector<64x128xf32>, vector<32x128xf32> -> vector<32x128xf32>
    %c0_3 = arith.constant 0 : index
    %c0_4 = arith.constant 0 : index
    %3 = vector.load %arg3[%c0_3, %c0_4] : memref<1x128xf32, #tpu.memory_space<vmem>>, vector<1x128xf32>
    %4 = vector.broadcast %3 : vector<1x128xf32> to vector<32x128xf32>
    %5 = arith.addf %2, %4 : vector<32x128xf32>
    %c0_5 = arith.constant 0 : index
    %c0_6 = arith.constant 0 : index
    %6 = vector.load %arg4[%c0_5, %c0_6] : memref<32x128xf32, #tpu.memory_space<vmem>>, vector<32x128xf32>
    tpu.vector_store %arg4[%c0_5, %c0_6], %5 {strides = array<i32>} : memref<32x128xf32, #tpu.memory_space<vmem>>, vector<32x128xf32>,
    return
  }
  func.func @transform_0(%arg0: i32) -> (i32, i32) {
    %c0_i32 = arith.constant 0 : i32
    %c0_i32_0 = arith.constant 0 : i32
    return %arg0, %c0_i32 : i32, i32
  }
  func.func @transform_1(%arg0: i32) -> (i32, i32) {
    %c0_i32 = arith.constant 0 : i32
    %c0_i32_0 = arith.constant 0 : i32
    %c0_i32_1 = arith.constant 0 : i32
    return %c0_i32, %c0_i32_0 : i32, i32
  }
  func.func @transform_2(%arg0: i32) -> (i32, i32) {
    %c0_i32 = arith.constant 0 : i32
    %c0_i32_0 = arith.constant 0 : i32
    %c0_i32_1 = arith.constant 0 : i32
    return %c0_i32, %c0_i32_0 : i32, i32
  }
  func.func @transform_3(%arg0: i32) -> (i32, i32) {
    %c0_i32 = arith.constant 0 : i32
    %c0_i32_0 = arith.constant 0 : i32
    return %arg0, %c0_i32 : i32, i32
  }
}

</mosaic_0001>

<llo_original>
// kernel: tpu_custom_call.1
$region0: #{tpu_custom_call.1}
  #allocation0 [shape = 'u32[]', space=smem, size = 0x4, offset = 0x4, fixed_abs, tag = 'smem constant byte address 0x4 - core index']
  #allocation1 [shape = 'u32[72,128]{1,0:T(1,128)}', space=vmem, size = 0x9000, scoped, tag = 'internal scratch']
  %s0 = inlined_call_operand.hbm [shape: f32[32,64], index: 0, kind: input, shape index: {}]
  %s1 = inlined_call_operand.hbm [shape: f32[64,128], index: 1, kind: input, shape index: {}]
  %s2 = inlined_call_operand.vmem [shape: f32[1,128], index: 2, kind: input, shape index: {}]
  %s3 = inlined_call_operand.hbm [shape: f32[32,128], index: 3, kind: output, shape index: {}]
  %s4 = sld [smem:[#allocation0]]
  $region30: #{tpu_custom_call.1} parent=0
    _
  %s6 = ssub.s32 1, %s4
  %s7 = scalar_select 0, %s6, %s4
  $region1: #{tpu_custom_call.1} parent=0
    #allocation2 [shape = 'u8[16384]{0}', space=vmem, size = 0x4000, scoped, tag = 'input window, operand 0, single buffered']
    #allocation3 [shape = 's32[1]{0}', space=sflag, size = 0x4, scoped, tag = 'scoped memory for tpu_custom_call.1']
    #allocation4 [shape = 's32[1]{0}', space=sflag, size = 0x4, scoped, tag = 'scoped memory for tpu_custom_call.1']
    #allocation5 [shape = 'u8[32768]{0}', space=vmem, size = 0x8000, scoped, tag = 'input window, operand 1, single buffered']
    #allocation6 [shape = 's32[1]{0}', space=sflag, size = 0x4, scoped, tag = 'scoped memory for tpu_custom_call.1']
    #allocation7 [shape = 'u8[16384]{0}', space=vmem, size = 0x4000, scoped, tag = 'output window, operand 0, single buffered']
    %8 = vsyncpa [#allocation3], 0
    %9 = vsyncpa [#allocation6], 0
    %10 = vsyncpa [#allocation4], 0
    // Predicated region
    $region2: #{tpu_custom_call.1} parent=1 // pred_check
      _
    $region3: #{tpu_custom_call.1} parent=1 // pred_check_branch
      %12 = sbr.rel (0) target = $region5
    $region4: #{tpu_custom_call.1} parent=1 // pred_region
      %14 = vsyncadd [#allocation3], 0
      %s15 = sshll.u32 %s0, 4
      %s16 = int_to_ptr.hbm [resolvable:$true] %s15
      %s17 = sshll.u32 [#allocation2], 4
      %s18 = int_to_ptr.vmem [resolvable:$true] %s17
      %23 = dma.hbm_to_vmem [thread:$0]  %s16, 512, %s18, [#allocation3], 128, 128, 8
    $region5: #{tpu_custom_call.1} parent=1 // pred_fallthru
      _
    // Predicated region
    $region6: #{tpu_custom_call.1} parent=1 // pred_check
      _
    $region7: #{tpu_custom_call.1} parent=1 // pred_check_branch
      %25 = sbr.rel (0) target = $region9
    $region8: #{tpu_custom_call.1} parent=1 // pred_region
      %27 = vsyncadd [#allocation6], 0
      %s28 = sshll.u32 %s1, 4
      %s29 = int_to_ptr.hbm [resolvable:$true] %s28
      %s30 = sshll.u32 [#allocation5], 4
      %s31 = int_to_ptr.vmem [resolvable:$true] %s30
      %36 = dma.hbm_to_vmem [thread:$0]  %s29, 1024, %s31, [#allocation6], 128, 128, 8
    $region9: #{tpu_custom_call.1} parent=1 // pred_fallthru
      _
    // Predicated region
    $region10: #{tpu_custom_call.1} parent=1 // pred_check
      _
    $region11: #{tpu_custom_call.1} parent=1 // pred_check_branch
      %38 = sbr.rel (0) target = $region13
    $region12: #{tpu_custom_call.1} parent=1 // pred_region
      _
    $region13: #{tpu_custom_call.1} parent=1 // pred_fallthru
      _
    // Predicated region
    $region14: #{tpu_custom_call.1} parent=1 // pred_check
      _
    $region15: #{tpu_custom_call.1} parent=1 // pred_check_branch
      %40 = sbr.rel (0) target = $region17
    $region16: #{tpu_custom_call.1} parent=1 // pred_region
      %42 = dma.done [#allocation3], 512
    $region17: #{tpu_custom_call.1} parent=1 // pred_fallthru
      _
    // Predicated region
    $region18: #{tpu_custom_call.1} parent=1 // pred_check
      _
    $region19: #{tpu_custom_call.1} parent=1 // pred_check_branch
      %44 = sbr.rel (0) target = $region21
    $region20: #{tpu_custom_call.1} parent=1 // pred_region
      %46 = dma.done [#allocation6], 1024
    $region21: #{tpu_custom_call.1} parent=1 // pred_fallthru
      _
    %v47 = vld [vmem:[#allocation2] sm:$0xff]
    %v48 = vld [vmem:[#allocation2 + $0x8] sm:$0xff]
    %v49 = vld [vmem:[#allocation2 + $0x10] sm:$0xff]
    %v50 = vld [vmem:[#allocation2 + $0x18] sm:$0xff]
    %v51 = vld [vmem:[#allocation5] sm:$0xff]
    %v52 = vld [vmem:[#allocation5 + $0x8] sm:$0xff]
    %v53 = vld [vmem:[#allocation5 + $0x10] sm:$0xff]
    %v54 = vld [vmem:[#allocation5 + $0x18] sm:$0xff]
    %v55 = vld [vmem:[#allocation5 + $0x20] sm:$0xff]
    %v56 = vld [vmem:[#allocation5 + $0x28] sm:$0xff]
    %v57 = vld [vmem:[#allocation5 + $0x30] sm:$0xff]
    %v58 = vld [vmem:[#allocation5 + $0x38] sm:$0xff]
    %v59 = vld [vmem:[%s2] sm:$0x1]
    %v61 = vperm.slane %v59, 0
    %vm63 = vcmask 523264
    %v65 = vsel %vm63, %v47, 0
    %v68 = vsel %vm63, %v48, 0
    %v71 = vsel %vm63, %v49, 0
    %v74 = vsel %vm63, %v50, 0
    %76 = vmatpush.msra.mxu0 0.0
    %77 = vmatpush.msra.mxu0 0.0
    %78 = vmatpush.msra.mxu0 0.0
    %79 = vmatpush.msra.mxu0 0.0
    %80 = vmatpush.msra.mxu0 0.0
    %81 = vmatpush.msra.mxu0 0.0
    %82 = vmatpush.msra.mxu0 0.0
    %83 = vmatpush.msra.mxu0 0.0
    %84 = vmatpush.msra.mxu0 %v58
    %85 = vmatpush.msra.mxu0 %v57
    %86 = vmatpush.msra.mxu0 %v56
    %87 = vmatpush.msra.mxu0 %v55
    %88 = vmatpush.msra.mxu0 %v54
    %89 = vmatpush.msra.mxu0 %v53
    %90 = vmatpush.msra.mxu0 %v52
    %91 = vmatpush.msra.mxu0 %v51
    %92 = vmatmul.f32.gmra.mxu0 %v65
    %v93 = vpop.f32.mrf.mxu0
    %v94 = vadd.f32 %v61, %v93
    %95 = vmatmul.f32.gmra.mxu0 %v68
    %v96 = vpop.f32.mrf.mxu0
    %v97 = vadd.f32 %v61, %v96
    %98 = vmatmul.f32.gmra.mxu0 %v71
    %v99 = vpop.f32.mrf.mxu0
    %v100 = vadd.f32 %v61, %v99
    %101 = vmatmul.f32.gmra.mxu0 %v74
    %v102 = vpop.f32.mrf.mxu0
    %v103 = vadd.f32 %v61, %v102
    %104 = vdwg.mxu0
    %105 = vst [vmem:[#allocation7] sm:$0xff] %v94
    %106 = vst [vmem:[#allocation7 + $0x8] sm:$0xff] %v97
    %107 = vst [vmem:[#allocation7 + $0x10] sm:$0xff] %v100
    %108 = vst [vmem:[#allocation7 + $0x18] sm:$0xff] %v103
    // Predicated region
    $region22: #{tpu_custom_call.1} parent=1 // pred_check
      _
    $region23: #{tpu_custom_call.1} parent=1 // pred_check_branch
      %110 = sbr.rel (0) target = $region25
    $region24: #{tpu_custom_call.1} parent=1 // pred_region
      %112 = vsyncadd [#allocation4], 0
      %s113 = sshll.u32 [#allocation7], 4
      %s114 = int_to_ptr.vmem [resolvable:$true] %s113
      %s115 = sshll.u32 %s3, 4
      %s116 = int_to_ptr.hbm [resolvable:$true] %s115
      %121 = dma.vmem_to_hbm [thread:$0]  %s114, 512, %s116, [#allocation4], 128, 128, 8
    $region25: #{tpu_custom_call.1} parent=1 // pred_fallthru
      _
    // Predicated region
    $region26: #{tpu_custom_call.1} parent=1 // pred_check
      _
    $region27: #{tpu_custom_call.1} parent=1 // pred_check_branch
      %123 = sbr.rel (0) target = $region29
    $region28: #{tpu_custom_call.1} parent=1 // pred_region
      %125 = dma.done [#allocation4], 512
    $region29: #{tpu_custom_call.1} parent=1 // pred_fallthru
      _
    %126 = vsyncpa [#allocation3], 1
    %127 = vsyncpa [#allocation6], 1
    %128 = vsyncpa [#allocation4], 1

</llo_original>
